<compile_context>
chip_gen: v7x
topology: tpu7x:2x2x1
jax: 0.10.0
libtpu: 0.0.40
codegen_flags: <defaults>
</compile_context>

<pallas_src>
import functools

import jax
import jax.numpy as jnp
from jax import lax
from jax.experimental import pallas as pl
from jax.experimental.pallas import tpu as pltpu


# ----------------------------------------------------------------------------
# Fused Pallas kernel: conv1 + bias + ReLU + conv2 + bias, intermediate in regs
# ----------------------------------------------------------------------------
def _fused_conv_relu_conv_kernel(xc_ref, w1_ref, w2_ref, sdn_ref, sup_ref,
                                 b1_ref, b2_ref, o_ref):
    """All refs are whole-array VMEM blocks (grid=(1,)).

    xc_ref:  (M, 3*W*Cin)   input rows with the 3 vertical taps pre-concatenated along K
    w1_ref:  (3*W*Cin,  W*Cmid)  banded conv1 weights, vertical taps stacked along K
    w2_ref:  (3*W*Cmid, OUTP)    banded conv2 weights (columns >= W*Cout are zero pad)
    sdn_ref: (M, M)  masked row-shift: (S_dn @ y)[r] = y[r-1] within an image, else 0
    sup_ref: (M, M)  masked row-shift: (S_up @ y)[r] = y[r+1] within an image, else 0
    b1_ref:  (1, W*Cmid)  conv1 bias tiled over W (lane layout ow*Cmid + d)
    b2_ref:  (1, OUTP)    conv2 bias tiled over W, zero-padded to OUTP lanes
    o_ref:   (M, OUTP)    lane-dense output slab
    """
    # ---- conv1 + bias + ReLU: one MXU matmul (K = 3*W*Cin), f32 accumulate.
    y = jnp.dot(xc_ref[...], w1_ref[...], preferred_element_type=jnp.float32)
    y = jnp.maximum(y + b1_ref[...], 0.0)                      # (M, W*Cmid), register-resident

    # ---- conv2 vertical taps: masked row shifts of the register-resident
    #      intermediate via two tiny matmuls (no VMEM staging, no halo stores).
    y_dn = jnp.dot(sdn_ref[...], y, preferred_element_type=jnp.float32)   # row h-1 (zero halo)
    y_up = jnp.dot(sup_ref[...], y, preferred_element_type=jnp.float32)   # row h+1 (zero halo)

    # ---- conv2 + bias: one MXU matmul with K = 3*W*Cmid (taps concatenated on lanes).
    y_cat = jnp.concatenate([y_dn, y, y_up], axis=-1)          # (M, 3*W*Cmid)
    o_ref[...] = (
        jnp.dot(y_cat, w2_ref[...], preferred_element_type=jnp.float32) + b2_ref[...]
    ).astype(o_ref.dtype)


# ----------------------------------------------------------------------------
# One-time parameter folding (hoisted out of the per-call forward path)
# ----------------------------------------------------------------------------
def prepare_sequential_params(params, input_shape):
    """Fold the SequentialModule parameters ONCE into fused-kernel operands.

    Banded weight B[kh*W*Cin + iw*Cin + c, ow*Cout + d] = w[d, c, kh, kw] with
    kw = iw - ow + pad (zero outside the band): folds the horizontal taps and the
    horizontal SAME padding into the matmul weight, and stacks the vertical taps
    along the contraction axis so each conv is a single MXU matmul in the kernel.
    """
    N, Cin, H, W = input_shape
    Cmid, cin_w, KH, KW = params["w0"].shape
    Cout, cmid_w, KH2, KW2 = params["w1"].shape
    assert cin_w == Cin and cmid_w == Cmid
    # The banded folding + fixed 3-tap kernel structure below assumes 3x3 SAME convs.
    assert KH == KW == KH2 == KW2 == 3, "folding derived for 3x3 convs with padding=1"
    pad = (KW - 1) // 2
    out_p = ((W * Cout + 127) // 128) * 128            # lane-dense output slab width
    M = N * H

    def banded_cat(w_oihw, out_cols):
        co, ci, n_kh, n_kw = w_oihw.shape
        mats = []
        for kh in range(n_kh):
            b = jnp.zeros((W * ci, W * co), jnp.float32)
            for kw in range(n_kw):
                shift = jnp.eye(W, W, k=pad - kw, dtype=jnp.float32)   # (iw, ow) band
                tap = w_oihw[:, :, kh, kw].T.astype(jnp.float32)       # (Cin, Cout)
                b = b + jnp.kron(shift, tap)
            if out_cols > W * co:
                b = jnp.pad(b, ((0, 0), (0, out_cols - W * co)))
            mats.append(b)
        return jnp.concatenate(mats, axis=0)            # (KH*W*ci, out_cols)

    # Masked row-shift operators for conv2's vertical taps on the flattened
    # (n*H + h) row axis: shift within an image, zero at the image boundary rows.
    r = jnp.arange(M)
    s_dn = jnp.eye(M, M, k=-1, dtype=jnp.float32) * (r % H != 0).astype(jnp.float32)[:, None]
    s_up = jnp.eye(M, M, k=1, dtype=jnp.float32) * (r % H != H - 1).astype(jnp.float32)[:, None]

    folded = {
        "w1": banded_cat(params["w0"], W * Cmid),                        # (3*W*Cin,  W*Cmid)
        "w2": banded_cat(params["w1"], out_p),                           # (3*W*Cmid, out_p)
        "sdn": s_dn,                                                     # (M, M)
        "sup": s_up,                                                     # (M, M)
        "b1": jnp.tile(params["b0"].astype(jnp.float32), W)[None, :],    # (1, W*Cmid)
        "b2": jnp.pad(jnp.tile(params["b1"].astype(jnp.float32), W),
                      (0, out_p - W * Cout))[None, :],                   # (1, out_p)
    }
    meta = {"cout": Cout}
    return folded, meta


# ----------------------------------------------------------------------------
# SequentialModule forward:  Conv2d(4->8) -> ReLU -> Conv2d(8->4)
# ----------------------------------------------------------------------------
@functools.partial(jax.jit, static_argnames=("cout",))
def sequential_module_forward(x_nchw, folded, *, cout):
    N, Cin, H, W = x_nchw.shape
    M = N * H
    wcin = W * Cin
    kh = folded["w1"].shape[0] // wcin              # number of vertical taps (3)
    pad = (kh - 1) // 2
    wcmid = folded["w1"].shape[1]
    out_p = folded["w2"].shape[1]
    assert folded["sdn"].shape[0] == M, "params were folded for a different (N, H)"
    assert folded["w2"].shape[0] == kh * wcmid

    # Per-call layout plumbing on the tiny input: one NCHW->NHWC transpose, one
    # vertical zero-halo pad, and the vertical taps concatenated along K so conv1
    # is a single MXU matmul inside the kernel.
    x_nhwc = jnp.transpose(x_nchw, (0, 2, 3, 1)).astype(jnp.float32)
    x_padh = jnp.pad(x_nhwc, ((0, 0), (pad, pad), (0, 0), (0, 0)))
    x_cat = jnp.concatenate(
        [x_padh[:, k:k + H].reshape(M, wcin) for k in range(kh)], axis=1)   # (M, 3*W*Cin)

    slab = pl.pallas_call(
        _fused_conv_relu_conv_kernel,
        out_shape=jax.ShapeDtypeStruct((M, out_p), jnp.float32),
        grid_spec=pltpu.PrefetchScalarGridSpec(
            num_scalar_prefetch=0,
            # Whole problem (<1 MiB of operands) fits VMEM on every TPU generation,
            # so a single grid step avoids per-step pipeline overhead and DMAs the
            # folded weights exactly once.  For large N*H: split M into a "parallel"
            # grid axis (keep the weight index_maps constant) and re-budget for
            # v7x's 64 MiB VMEM; cast operands to bf16 once MXU-bound.
            grid=(1,),
            in_specs=[
                pl.BlockSpec((M, kh * wcin), lambda i: (0, 0)),
                pl.BlockSpec((kh * wcin, wcmid), lambda i: (0, 0)),
                pl.BlockSpec((kh * wcmid, out_p), lambda i: (0, 0)),
                pl.BlockSpec((M, M), lambda i: (0, 0)),
                pl.BlockSpec((M, M), lambda i: (0, 0)),
                pl.BlockSpec((1, wcmid), lambda i: (0, 0)),
                pl.BlockSpec((1, out_p), lambda i: (0, 0)),
            ],
            out_specs=pl.BlockSpec((M, out_p), lambda i: (0, 0)),
        ),
        compiler_params=pltpu.CompilerParams(
            dimension_semantics=("arbitrary",),
        ),
    )(x_cat, folded["w1"], folded["w2"], folded["sdn"], folded["sup"],
      folded["b1"], folded["b2"])

    # Single slice/reshape/transpose at the very end of the whole sequence.
    out_nhwc = slab[:, : W * cout].reshape(N, H, W, cout)
    return jnp.transpose(out_nhwc, (0, 3, 1, 2))                           # NHWC -> NCHW


# ----------------------------------------------------------------------------
# Pure-JAX reference (for correctness check)
# ----------------------------------------------------------------------------
def _reference_forward(x_nchw, params):
    def conv(x, w, b):
        y = lax.conv_general_dilated(
            x, w, window_strides=(1, 1), padding="SAME",
            dimension_numbers=("NCHW", "OIHW", "NCHW"))
        return y + b.reshape(1, -1, 1, 1)

    x = conv(x_nchw, params["w0"], params["b0"])
    x = jnp.maximum(x, 0.0)
    x = conv(x, params["w1"], params["b1"])
    return x


if __name__ == "__main__":
    key = jax.random.PRNGKey(0)
    k_x, k_w0, k_b0, k_w1, k_b1 = jax.random.split(key, 5)

    N, Cin, H, W = 2, 4, 16, 16
    Cmid, Cout, K = 8, 4, 3

    x = jax.random.normal(k_x, (N, Cin, H, W), dtype=jnp.float32)

    # Deterministic parameter init (kaiming-ish scale), PyTorch OIHW layout.
    params = {
        "w0": jax.random.normal(k_w0, (Cmid, Cin, K, K), jnp.float32)
              * (2.0 / (Cin * K * K)) ** 0.5,
        "b0": jax.random.normal(k_b0, (Cmid,), jnp.float32) * 0.1,
        "w1": jax.random.normal(k_w1, (Cout, Cmid, K, K), jnp.float32)
              * (2.0 / (Cmid * K * K)) ** 0.5,
        "b1": jax.random.normal(k_b1, (Cout,), jnp.float32) * 0.1,
    }

    # One-time parameter folding (hoisted out of the per-call forward path).
    folded, meta = prepare_sequential_params(params, x.shape)

    out = sequential_module_forward(x, folded, cout=meta["cout"])
    out = jax.block_until_ready(out)

    ref = _reference_forward(x, params)
    assert out.shape == (N, Cout, H, W)
    assert jnp.allclose(out, ref, atol=1e-4, rtol=1e-4)

    print("KERNEL_OK")
</pallas_src>

<mosaic_0001>
module attributes {stable_mosaic.version = 11 : i64} {
  func.func @_fused_conv_relu_conv_kernel(%arg0: i32, %arg1: memref<32x192xf32, #tpu.memory_space<vmem>>, %arg2: memref<192x128xf32, #tpu.memory_space<vmem>>, %arg3: memref<384x128xf32, #tpu.memory_space<vmem>>, %arg4: memref<32x32xf32, #tpu.memory_space<vmem>>, %arg5: memref<32x32xf32, #tpu.memory_space<vmem>>, %arg6: memref<1x128xf32, #tpu.memory_space<vmem>>, %arg7: memref<1x128xf32, #tpu.memory_space<vmem>>, %arg8: memref<32x128xf32, #tpu.memory_space<vmem>>) attributes {dimension_semantics = [#tpu.dimension_semantics<arbitrary>], iteration_bounds = array<i64: 1>, scalar_prefetch = 0 : i64, scratch_operands = 0 : i64, tpu.core_type = #tpu.core_type<tc>, window_params = [{pipeline_mode = #tpu.pipeline_mode<synchronous>, transform_indices = @transform_0, window_bounds = array<i64: 32, 192>}, {pipeline_mode = #tpu.pipeline_mode<synchronous>, transform_indices = @transform_1, window_bounds = array<i64: 192, 128>}, {pipeline_mode = #tpu.pipeline_mode<synchronous>, transform_indices = @transform_2, window_bounds = array<i64: 384, 128>}, {pipeline_mode = #tpu.pipeline_mode<synchronous>, transform_indices = @transform_3, window_bounds = array<i64: 32, 32>}, {pipeline_mode = #tpu.pipeline_mode<synchronous>, transform_indices = @transform_4, window_bounds = array<i64: 32, 32>}, {pipeline_mode = #tpu.pipeline_mode<synchronous>, transform_indices = @transform_5, window_bounds = array<i64: 1, 128>}, {pipeline_mode = #tpu.pipeline_mode<synchronous>, transform_indices = @transform_6, window_bounds = array<i64: 1, 128>}, {pipeline_mode = #tpu.pipeline_mode<synchronous>, transform_indices = @transform_7, window_bounds = array<i64: 32, 128>}]} {
    %c0 = arith.constant 0 : index
    %c0_0 = arith.constant 0 : index
    %0 = vector.load %arg1[%c0, %c0_0] : memref<32x192xf32, #tpu.memory_space<vmem>>, vector<32x192xf32>
    %c0_1 = arith.constant 0 : index
    %c0_2 = arith.constant 0 : index
    %1 = vector.load %arg2[%c0_1, %c0_2] : memref<192x128xf32, #tpu.memory_space<vmem>>, vector<192x128xf32>
    %cst = arith.constant dense<0.000000e+00> : vector<32x128xf32>
    %2 = tpu.matmul %0, %1, %cst {dimension_numbers = #tpu.dot_dimension_numbers<[1], [0], [0], [1], [0, 0, 1, 1], [], []>} : vector<32x192xf32>, vector<192x128xf32>, vector<32x128xf32> -> vector<32x128xf32>
    %c0_3 = arith.constant 0 : index
    %c0_4 = arith.constant 0 : index
    %3 = vector.load %arg6[%c0_3, %c0_4] : memref<1x128xf32, #tpu.memory_space<vmem>>, vector<1x128xf32>
    %4 = vector.broadcast %3 : vector<1x128xf32> to vector<32x128xf32>
    %5 = arith.addf %2, %4 : vector<32x128xf32>
    %cst_5 = arith.constant 0.000000e+00 : f32
    %6 = vector.broadcast %cst_5 : f32 to vector<32x128xf32>
    %7 = arith.maximumf %5, %6 : vector<32x128xf32>
    %c0_6 = arith.constant 0 : index
    %c0_7 = arith.constant 0 : index
    %8 = vector.load %arg4[%c0_6, %c0_7] : memref<32x32xf32, #tpu.memory_space<vmem>>, vector<32x32xf32>
    %cst_8 = arith.constant dense<0.000000e+00> : vector<32x128xf32>
    %9 = tpu.matmul %8, %7, %cst_8 {dimension_numbers = #tpu.dot_dimension_numbers<[1], [0], [0], [1], [0, 0, 1, 1], [], []>} : vector<32x32xf32>, vector<32x128xf32>, vector<32x128xf32> -> vector<32x128xf32>
    %c0_9 = arith.constant 0 : index
    %c0_10 = arith.constant 0 : index
    %10 = vector.load %arg5[%c0_9, %c0_10] : memref<32x32xf32, #tpu.memory_space<vmem>>, vector<32x32xf32>
    %cst_11 = arith.constant dense<0.000000e+00> : vector<32x128xf32>
    %11 = tpu.matmul %10, %7, %cst_11 {dimension_numbers = #tpu.dot_dimension_numbers<[1], [0], [0], [1], [0, 0, 1, 1], [], []>} : vector<32x32xf32>, vector<32x128xf32>, vector<32x128xf32> -> vector<32x128xf32>
    %12 = tpu.concatenate %9, %7, %11 in 1 : vector<32x128xf32>, vector<32x128xf32>, vector<32x128xf32> -> vector<32x384xf32>
    %c0_12 = arith.constant 0 : index
    %c0_13 = arith.constant 0 : index
    %13 = vector.load %arg3[%c0_12, %c0_13] : memref<384x128xf32, #tpu.memory_space<vmem>>, vector<384x128xf32>
    %cst_14 = arith.constant dense<0.000000e+00> : vector<32x128xf32>
    %14 = tpu.matmul %12, %13, %cst_14 {dimension_numbers = #tpu.dot_dimension_numbers<[1], [0], [0], [1], [0, 0, 1, 1], [], []>} : vector<32x384xf32>, vector<384x128xf32>, vector<32x128xf32> -> vector<32x128xf32>
    %c0_15 = arith.constant 0 : index
    %c0_16 = arith.constant 0 : index
    %15 = vector.load %arg7[%c0_15, %c0_16] : memref<1x128xf32, #tpu.memory_space<vmem>>, vector<1x128xf32>
    %16 = vector.broadcast %15 : vector<1x128xf32> to vector<32x128xf32>
    %17 = arith.addf %14, %16 : vector<32x128xf32>
    %c0_17 = arith.constant 0 : index
    %c0_18 = arith.constant 0 : index
    %18 = vector.load %arg8[%c0_17, %c0_18] : memref<32x128xf32, #tpu.memory_space<vmem>>, vector<32x128xf32>
    tpu.vector_store %arg8[%c0_17, %c0_18], %17 {strides = array<i32>} : memref<32x128xf32, #tpu.memory_space<vmem>>, vector<32x128xf32>,
    return
  }
  func.func @transform_0(%arg0: i32) -> (i32, i32) {
    %c0_i32 = arith.constant 0 : i32
    %c0_i32_0 = arith.constant 0 : i32
    %c0_i32_1 = arith.constant 0 : i32
    return %c0_i32, %c0_i32_0 : i32, i32
  }
  func.func @transform_1(%arg0: i32) -> (i32, i32) {
    %c0_i32 = arith.constant 0 : i32
    %c0_i32_0 = arith.constant 0 : i32
    %c0_i32_1 = arith.constant 0 : i32
    return %c0_i32, %c0_i32_0 : i32, i32
  }
  func.func @transform_2(%arg0: i32) -> (i32, i32) {
    %c0_i32 = arith.constant 0 : i32
    %c0_i32_0 = arith.constant 0 : i32
    %c0_i32_1 = arith.constant 0 : i32
    return %c0_i32, %c0_i32_0 : i32, i32
  }
  func.func @transform_3(%arg0: i32) -> (i32, i32) {
    %c0_i32 = arith.constant 0 : i32
    %c0_i32_0 = arith.constant 0 : i32
    %c0_i32_1 = arith.constant 0 : i32
    return %c0_i32, %c0_i32_0 : i32, i32
  }
  func.func @transform_4(%arg0: i32) -> (i32, i32) {
    %c0_i32 = arith.constant 0 : i32
    %c0_i32_0 = arith.constant 0 : i32
    %c0_i32_1 = arith.constant 0 : i32
    return %c0_i32, %c0_i32_0 : i32, i32
  }
  func.func @transform_5(%arg0: i32) -> (i32, i32) {
    %c0_i32 = arith.constant 0 : i32
    %c0_i32_0 = arith.constant 0 : i32
    %c0_i32_1 = arith.constant 0 : i32
    return %c0_i32, %c0_i32_0 : i32, i32
  }
  func.func @transform_6(%arg0: i32) -> (i32, i32) {
    %c0_i32 = arith.constant 0 : i32
    %c0_i32_0 = arith.constant 0 : i32
    %c0_i32_1 = arith.constant 0 : i32
    return %c0_i32, %c0_i32_0 : i32, i32
  }
  func.func @transform_7(%arg0: i32) -> (i32, i32) {
    %c0_i32 = arith.constant 0 : i32
    %c0_i32_0 = arith.constant 0 : i32
    %c0_i32_1 = arith.constant 0 : i32
    return %c0_i32, %c0_i32_0 : i32, i32
  }
}

</mosaic_0001>

<llo_original>
// kernel: sequential_module_forward.1
$region0: #{sequential_module_forward.1}
  #allocation0 [shape = 'u32[]', space=smem, size = 0x4, offset = 0x4, fixed_abs, tag = 'smem constant byte address 0x4 - core index']
  #allocation1 [shape = 'u32[144,128]{1,0:T(1,128)}', space=vmem, size = 0x12000, scoped, tag = 'internal scratch']
  %s0 = inlined_call_operand.vmem [shape: f32[32,192], index: 0, kind: input, shape index: {}]
  %s1 = inlined_call_operand.vmem [shape: f32[192,128], index: 1, kind: input, shape index: {}]
  %s2 = inlined_call_operand.vmem [shape: f32[384,128], index: 2, kind: input, shape index: {}]
  %s3 = inlined_call_operand.vmem [shape: f32[32,32], index: 3, kind: input, shape index: {}]
  %s4 = inlined_call_operand.vmem [shape: f32[32,32], index: 4, kind: input, shape index: {}]
  %s5 = inlined_call_operand.vmem [shape: f32[1,128], index: 5, kind: input, shape index: {}]
  %s6 = inlined_call_operand.vmem [shape: f32[1,128], index: 6, kind: input, shape index: {}]
  %s7 = inlined_call_operand.vmem [shape: f32[32,128], index: 7, kind: output, shape index: {}]
  %s8 = sld [smem:[#allocation0]]
  $region38: #{sequential_module_forward.1} parent=0
    _
  %s10 = ssub.s32 1, %s8
  %s11 = scalar_select 0, %s10, %s8
  // Predicated region
  $region2: #{sequential_module_forward.1} parent=0 // pred_check
    _
  $region3: #{sequential_module_forward.1} parent=0 // pred_check_branch
    %13 = sbr.rel (0) target = $region5
  $region4: #{sequential_module_forward.1} parent=0 // pred_region
    _
  $region5: #{sequential_module_forward.1} parent=0 // pred_fallthru
    _
  // Predicated region
  $region6: #{sequential_module_forward.1} parent=0 // pred_check
    _
  $region7: #{sequential_module_forward.1} parent=0 // pred_check_branch
    %15 = sbr.rel (0) target = $region9
  $region8: #{sequential_module_forward.1} parent=0 // pred_region
    _
  $region9: #{sequential_module_forward.1} parent=0 // pred_fallthru
    _
  // Predicated region
  $region10: #{sequential_module_forward.1} parent=0 // pred_check
    _
  $region11: #{sequential_module_forward.1} parent=0 // pred_check_branch
    %17 = sbr.rel (0) target = $region13
  $region12: #{sequential_module_forward.1} parent=0 // pred_region
    _
  $region13: #{sequential_module_forward.1} parent=0 // pred_fallthru
    _
  // Predicated region
  $region14: #{sequential_module_forward.1} parent=0 // pred_check
    _
  $region15: #{sequential_module_forward.1} parent=0 // pred_check_branch
    %19 = sbr.rel (0) target = $region17
  $region16: #{sequential_module_forward.1} parent=0 // pred_region
    _
  $region17: #{sequential_module_forward.1} parent=0 // pred_fallthru
    _
  // Predicated region
  $region18: #{sequential_module_forward.1} parent=0 // pred_check
    _
  $region19: #{sequential_module_forward.1} parent=0 // pred_check_branch
    %21 = sbr.rel (0) target = $region21
  $region20: #{sequential_module_forward.1} parent=0 // pred_region
    _
  $region21: #{sequential_module_forward.1} parent=0 // pred_fallthru
    _
  // Predicated region
  $region22: #{sequential_module_forward.1} parent=0 // pred_check
    _
  $region23: #{sequential_module_forward.1} parent=0 // pred_check_branch
    %23 = sbr.rel (0) target = $region25
  $region24: #{sequential_module_forward.1} parent=0 // pred_region
    _
  $region25: #{sequential_module_forward.1} parent=0 // pred_fallthru
    _
  // Predicated region
  $region26: #{sequential_module_forward.1} parent=0 // pred_check
    _
  $region27: #{sequential_module_forward.1} parent=0 // pred_check_branch
    %25 = sbr.rel (0) target = $region29
  $region28: #{sequential_module_forward.1} parent=0 // pred_region
    _
  $region29: #{sequential_module_forward.1} parent=0 // pred_fallthru
    _
  %v26 = vld [vmem:[%s0] sm:$0xff]
  %v27 = vld [vmem:[%s0 + $0x8] sm:$0xff]
  %v28 = vld [vmem:[%s0 + $0x10] sm:$0xff]
  %v29 = vld [vmem:[%s0 + $0x18] sm:$0xff]
  %v30 = vld [vmem:[%s0 + $0x20] sm:$0xff]
  %v31 = vld [vmem:[%s0 + $0x28] sm:$0xff]
  %v32 = vld [vmem:[%s0 + $0x30] sm:$0xff]
  %v33 = vld [vmem:[%s0 + $0x38] sm:$0xff]
  %v34 = vld [vmem:[%s1] sm:$0xff]
  %v35 = vld [vmem:[%s1 + $0x8] sm:$0xff]
  %v36 = vld [vmem:[%s1 + $0x10] sm:$0xff]
  %v37 = vld [vmem:[%s1 + $0x18] sm:$0xff]
  %v38 = vld [vmem:[%s1 + $0x20] sm:$0xff]
  %v39 = vld [vmem:[%s1 + $0x28] sm:$0xff]
  %v40 = vld [vmem:[%s1 + $0x30] sm:$0xff]
  %v41 = vld [vmem:[%s1 + $0x38] sm:$0xff]
  %v42 = vld [vmem:[%s1 + $0x40] sm:$0xff]
  %v43 = vld [vmem:[%s1 + $0x48] sm:$0xff]
  %v44 = vld [vmem:[%s1 + $0x50] sm:$0xff]
  %v45 = vld [vmem:[%s1 + $0x58] sm:$0xff]
  %v46 = vld [vmem:[%s1 + $0x60] sm:$0xff]
  %v47 = vld [vmem:[%s1 + $0x68] sm:$0xff]
  %v48 = vld [vmem:[%s1 + $0x70] sm:$0xff]
  %v49 = vld [vmem:[%s1 + $0x78] sm:$0xff]
  %v50 = vld [vmem:[%s1 + $0x80] sm:$0xff]
  %v51 = vld [vmem:[%s1 + $0x88] sm:$0xff]
  %v52 = vld [vmem:[%s1 + $0x90] sm:$0xff]
  %v53 = vld [vmem:[%s1 + $0x98] sm:$0xff]
  %v54 = vld [vmem:[%s1 + $0xa0] sm:$0xff]
  %v55 = vld [vmem:[%s1 + $0xa8] sm:$0xff]
  %v56 = vld [vmem:[%s1 + $0xb0] sm:$0xff]
  %v57 = vld [vmem:[%s1 + $0xb8] sm:$0xff]
  %v58 = vld [vmem:[%s5] sm:$0x1]
  %v60 = vlaneseq
  %v61 = vshrl.u32 %v60, 7
  %v62 = vsub.s32 0, %v61
  %v63 = vrot.slane %v58, %v62
  %vm65 = vcmask 523264
  %v67 = vsel %vm65, %v27, 0
  %v70 = vsel %vm65, %v29, 0
  %v73 = vsel %vm65, %v31, 0
  %v76 = vsel %vm65, %v33, 0
  %78 = vmatprep.subr.mxu0 0.0
  %79 = vmatpush1.msra.mxu0 %v34
  %80 = vmatprep.subr.mxu0 0.0
  %81 = vmatpush1.msra.mxu0 %v35
  %82 = vmatprep.subr.mxu0 0.0
  %83 = vmatpush1.msra.mxu0 %v36
  %84 = vmatprep.subr.mxu0 0.0
  %85 = vmatpush1.msra.mxu0 %v37
  %86 = vmatprep.subr.mxu0 0.0
  %87 = vmatpush1.msra.mxu0 %v38
  %88 = vmatprep.subr.mxu0 0.0
  %89 = vmatpush1.msra.mxu0 %v39
  %90 = vmatprep.subr.mxu0 0.0
  %91 = vmatpush1.msra.mxu0 %v40
  %92 = vmatprep.subr.mxu0 0.0
  %93 = vmatpush1.msra.mxu0 %v41
  %94 = vmatprep.subr.mxu0 0.0
  %95 = vmatpush1.msra.mxu0 %v42
  %96 = vmatprep.subr.mxu0 0.0
  %97 = vmatpush1.msra.mxu0 %v43
  %98 = vmatprep.subr.mxu0 0.0
  %99 = vmatpush1.msra.mxu0 %v44
  %100 = vmatprep.subr.mxu0 0.0
  %101 = vmatpush1.msra.mxu0 %v45
  %102 = vmatprep.subr.mxu0 0.0
  %103 = vmatpush1.msra.mxu0 %v46
  %104 = vmatprep.subr.mxu0 0.0
  %105 = vmatpush1.msra.mxu0 %v47
  %106 = vmatprep.subr.mxu0 0.0
  %107 = vmatpush1.msra.mxu0 %v48
  %108 = vmatprep.subr.mxu0 0.0
  %109 = vmatpush1.msra.mxu0 %v49
  %110 = vmatprep.subr.mxu0 0.0
  %111 = vmatpush1.msra.mxu0 %v50
  %112 = vmatprep.subr.mxu0 0.0
  %113 = vmatpush1.msra.mxu0 %v51
  %114 = vmatprep.subr.mxu0 0.0
  %115 = vmatpush1.msra.mxu0 %v52
  %116 = vmatprep.subr.mxu0 0.0
  %117 = vmatpush1.msra.mxu0 %v53
  %118 = vmatprep.subr.mxu0 0.0
  %119 = vmatpush1.msra.mxu0 %v54
  %120 = vmatprep.subr.mxu0 0.0
  %121 = vmatpush1.msra.mxu0 %v55
  %122 = vmatprep.subr.mxu0 0.0
  %123 = vmatpush1.msra.mxu0 %v56
  %124 = vmatprep.subr.mxu0 0.0
  %125 = vmatpush1.msra.mxu0 %v57
  %126 = vmatprep.subr.mxu0 0.0
  %127 = vmatpush1.msra.mxu0 0.0
  %128 = vmatprep.subr.mxu0 0.0
  %129 = vmatpush1.msra.mxu0 0.0
  %130 = vmatprep.subr.mxu0 0.0
  %131 = vmatpush1.msra.mxu0 0.0
  %132 = vmatprep.subr.mxu0 0.0
  %133 = vmatpush1.msra.mxu0 0.0
  %134 = vmatprep.subr.mxu0 0.0
  %135 = vmatpush1.msra.mxu0 0.0
  %136 = vmatprep.subr.mxu0 0.0
  %137 = vmatpush1.msra.mxu0 0.0
  %138 = vmatprep.subr.mxu0 0.0
  %139 = vmatpush1.msra.mxu0 0.0
  %140 = vmatprep.subr.mxu0 0.0
  %141 = vmatpush1.msra.mxu0 0.0
  %142 = vmatprep.mubr.f32.mxu0 %v67
  %143 = vmatmul.mubr.f32.gmra.mrb[0].mxu0 %v26
  %v144 = vpop.f32.mrb[0].mxu0
  %v145 = vadd.f32 %v63, %v144
  %v146 = vpop.f32.mrb[0].mxu0
  %147 = vmatprep.mubr.f32.mxu0 %v70
  %148 = vmatmul.mubr.f32.gmra.mrb[0].mxu0 %v28
  %v149 = vpop.f32.mrb[0].mxu0
  %v150 = vadd.f32 %v63, %v149
  %v151 = vpop.f32.mrb[0].mxu0
  %152 = vmatprep.mubr.f32.mxu0 %v73
  %153 = vmatmul.mubr.f32.gmra.mrb[0].mxu0 %v30
  %v154 = vpop.f32.mrb[0].mxu0
  %v155 = vadd.f32 %v63, %v154
  %v156 = vpop.f32.mrb[0].mxu0
  %157 = vmatprep.mubr.f32.mxu0 %v76
  %158 = vmatmul.mubr.f32.gmra.mrb[0].mxu0 %v32
  %v159 = vpop.f32.mrb[0].mxu0
  %v160 = vadd.f32 %v63, %v159
  %v161 = vpop.f32.mrb[0].mxu0
  %162 = vdwg.mxu0
  %v163 = vmax.f32 %v145, 0.0
  %v164 = vmax.f32 %v150, 0.0
  %v165 = vmax.f32 %v155, 0.0
  %v166 = vmax.f32 %v160, 0.0
  %v167 = vld [vmem:[%s3] sm:$0xff]
  %v168 = vld [vmem:[%s3 + $0x8] sm:$0xff]
  %v169 = vld [vmem:[%s3 + $0x10] sm:$0xff]
  %v170 = vld [vmem:[%s3 + $0x18] sm:$0xff]
  %vm171 = vcmask 261120
  %v173 = vsel %vm171, %v167, 0
  %v176 = vsel %vm171, %v168, 0
  %v179 = vsel %vm171, %v169, 0
  %v182 = vsel %vm171, %v170, 0
  %184 = vmatprep.subr.mxu0 0.0
  %185 = vmatpush1.msra.mxu0 %v163
  %186 = vmatprep.subr.mxu0 0.0
  %187 = vmatpush1.msra.mxu0 %v164
  %188 = vmatprep.subr.mxu0 0.0
  %189 = vmatpush1.msra.mxu0 %v165
  %190 = vmatprep.subr.mxu0 0.0
  %191 = vmatpush1.msra.mxu0 %v166
  %192 = vmatprep.subr.mxu0 0.0
  %193 = vmatpush1.msra.mxu0 0.0
  %194 = vmatprep.subr.mxu0 0.0
  %195 = vmatpush1.msra.mxu0 0.0
  %196 = vmatprep.subr.mxu0 0.0
  %197 = vmatpush1.msra.mxu0 0.0
  %198 = vmatprep.subr.mxu0 0.0
  %199 = vmatpush1.msra.mxu0 0.0
  %200 = vmatprep.subr.mxu0 0.0
  %201 = vmatpush1.msra.mxu0 0.0
  %202 = vmatprep.subr.mxu0 0.0
  %203 = vmatpush1.msra.mxu0 0.0
  %204 = vmatprep.subr.mxu0 0.0
  %205 = vmatpush1.msra.mxu0 0.0
  %206 = vmatprep.subr.mxu0 0.0
  %207 = vmatpush1.msra.mxu0 0.0
  %208 = vmatprep.subr.mxu0 0.0
  %209 = vmatpush1.msra.mxu0 0.0
  %210 = vmatprep.subr.mxu0 0.0
  %211 = vmatpush1.msra.mxu0 0.0
  %212 = vmatprep.subr.mxu0 0.0
  %213 = vmatpush1.msra.mxu0 0.0
  %214 = vmatprep.subr.mxu0 0.0
  %215 = vmatpush1.msra.mxu0 0.0
  %216 = vmatprep.subr.mxu0 0.0
  %217 = vmatpush1.msra.mxu0 0.0
  %218 = vmatprep.subr.mxu0 0.0
  %219 = vmatpush1.msra.mxu0 0.0
  %220 = vmatprep.subr.mxu0 0.0
  %221 = vmatpush1.msra.mxu0 0.0
  %222 = vmatprep.subr.mxu0 0.0
  %223 = vmatpush1.msra.mxu0 0.0
  %224 = vmatprep.subr.mxu0 0.0
  %225 = vmatpush1.msra.mxu0 0.0
  %226 = vmatprep.subr.mxu0 0.0
  %227 = vmatpush1.msra.mxu0 0.0
  %228 = vmatprep.subr.mxu0 0.0
  %229 = vmatpush1.msra.mxu0 0.0
  %230 = vmatprep.subr.mxu0 0.0
  %231 = vmatpush1.msra.mxu0 0.0
  %232 = vmatprep.subr.mxu0 0.0
  %233 = vmatpush1.msra.mxu0 0.0
  %234 = vmatprep.subr.mxu0 0.0
  %235 = vmatpush1.msra.mxu0 0.0
  %236 = vmatprep.subr.mxu0 0.0
  %237 = vmatpush1.msra.mxu0 0.0
  %238 = vmatprep.subr.mxu0 0.0
  %239 = vmatpush1.msra.mxu0 0.0
  %240 = vmatprep.subr.mxu0 0.0
  %241 = vmatpush1.msra.mxu0 0.0
  %242 = vmatprep.subr.mxu0 0.0
  %243 = vmatpush1.msra.mxu0 0.0
  %244 = vmatprep.subr.mxu0 0.0
  %245 = vmatpush1.msra.mxu0 0.0
  %246 = vmatprep.subr.mxu0 0.0
  %247 = vmatpush1.msra.mxu0 0.0
  %248 = vmatprep.mubr.f32.mxu0 0.0
  %249 = vmatmul.mubr.f32.gmra.mrb[0].mxu0 %v173
  %v250 = vpop.f32.mrb[0].mxu0
  %v251 = vadd.f32 0.0, %v250
  %v252 = vpop.f32.mrb[0].mxu0
  %253 = vmatprep.mubr.f32.mxu0 0.0
  %254 = vmatmul.mubr.f32.gmra.mrb[0].mxu0 %v176
  %v255 = vpop.f32.mrb[0].mxu0
  %v256 = vadd.f32 0.0, %v255
  %v257 = vpop.f32.mrb[0].mxu0
  %258 = vmatprep.mubr.f32.mxu0 0.0
  %259 = vmatmul.mubr.f32.gmra.mrb[0].mxu0 %v179
  %v260 = vpop.f32.mrb[0].mxu0
  %v261 = vadd.f32 0.0, %v260
  %v262 = vpop.f32.mrb[0].mxu0
  %263 = vmatprep.mubr.f32.mxu0 0.0
  %264 = vmatmul.mubr.f32.gmra.mrb[0].mxu0 %v182
  %v265 = vpop.f32.mrb[0].mxu0
  %v266 = vadd.f32 0.0, %v265
  %v267 = vpop.f32.mrb[0].mxu0
  %268 = vdwg.mxu0
  %v269 = vld [vmem:[%s4] sm:$0xff]
  %v270 = vld [vmem:[%s4 + $0x8] sm:$0xff]
  %v271 = vld [vmem:[%s4 + $0x10] sm:$0xff]
  %v272 = vld [vmem:[%s4 + $0x18] sm:$0xff]
  %v274 = vsel %vm171, %v269, 0
  %v277 = vsel %vm171, %v270, 0
  %v280 = vsel %vm171, %v271, 0
  %v283 = vsel %vm171, %v272, 0
  %285 = vmatprep.subr.mxu0 0.0
  %286 = vmatpush1.msra.mxu0 %v163
  %287 = vmatprep.subr.mxu0 0.0
  %288 = vmatpush1.msra.mxu0 %v164
  %289 = vmatprep.subr.mxu0 0.0
  %290 = vmatpush1.msra.mxu0 %v165
  %291 = vmatprep.subr.mxu0 0.0
  %292 = vmatpush1.msra.mxu0 %v166
  %293 = vmatprep.subr.mxu0 0.0
  %294 = vmatpush1.msra.mxu0 0.0
  %295 = vmatprep.subr.mxu0 0.0
  %296 = vmatpush1.msra.mxu0 0.0
  %297 = vmatprep.subr.mxu0 0.0
  %298 = vmatpush1.msra.mxu0 0.0
  %299 = vmatprep.subr.mxu0 0.0
  %300 = vmatpush1.msra.mxu0 0.0
  %301 = vmatprep.subr.mxu0 0.0
  %302 = vmatpush1.msra.mxu0 0.0
  %303 = vmatprep.subr.mxu0 0.0
  %304 = vmatpush1.msra.mxu0 0.0
  %305 = vmatprep.subr.mxu0 0.0
  %306 = vmatpush1.msra.mxu0 0.0
  %307 = vmatprep.subr.mxu0 0.0
  %308 = vmatpush1.msra.mxu0 0.0
  %309 = vmatprep.subr.mxu0 0.0
  %310 = vmatpush1.msra.mxu0 0.0
  %311 = vmatprep.subr.mxu0 0.0
  %312 = vmatpush1.msra.mxu0 0.0
  %313 = vmatprep.subr.mxu0 0.0
  %314 = vmatpush1.msra.mxu0 0.0
  %315 = vmatprep.subr.mxu0 0.0
  %316 = vmatpush1.msra.mxu0 0.0
  %317 = vmatprep.subr.mxu0 0.0
  %318 = vmatpush1.msra.mxu0 0.0
  %319 = vmatprep.subr.mxu0 0.0
  %320 = vmatpush1.msra.mxu0 0.0
  %321 = vmatprep.subr.mxu0 0.0
  %322 = vmatpush1.msra.mxu0 0.0
  %323 = vmatprep.subr.mxu0 0.0
  %324 = vmatpush1.msra.mxu0 0.0
  %325 = vmatprep.subr.mxu0 0.0
  %326 = vmatpush1.msra.mxu0 0.0
  %327 = vmatprep.subr.mxu0 0.0
  %328 = vmatpush1.msra.mxu0 0.0
  %329 = vmatprep.subr.mxu0 0.0
  %330 = vmatpush1.msra.mxu0 0.0
  %331 = vmatprep.subr.mxu0 0.0
  %332 = vmatpush1.msra.mxu0 0.0
  %333 = vmatprep.subr.mxu0 0.0
  %334 = vmatpush1.msra.mxu0 0.0
  %335 = vmatprep.subr.mxu0 0.0
  %336 = vmatpush1.msra.mxu0 0.0
  %337 = vmatprep.subr.mxu0 0.0
  %338 = vmatpush1.msra.mxu0 0.0
  %339 = vmatprep.subr.mxu0 0.0
  %340 = vmatpush1.msra.mxu0 0.0
  %341 = vmatprep.subr.mxu0 0.0
  %342 = vmatpush1.msra.mxu0 0.0
  %343 = vmatprep.subr.mxu0 0.0
  %344 = vmatpush1.msra.mxu0 0.0
  %345 = vmatprep.subr.mxu0 0.0
  %346 = vmatpush1.msra.mxu0 0.0
  %347 = vmatprep.subr.mxu0 0.0
  %348 = vmatpush1.msra.mxu0 0.0
  %349 = vmatprep.mubr.f32.mxu0 0.0
  %350 = vmatmul.mubr.f32.gmra.mrb[0].mxu0 %v274
  %v351 = vpop.f32.mrb[0].mxu0
  %v352 = vadd.f32 0.0, %v351
  %v353 = vpop.f32.mrb[0].mxu0
  %354 = vmatprep.mubr.f32.mxu0 0.0
  %355 = vmatmul.mubr.f32.gmra.mrb[0].mxu0 %v277
  %v356 = vpop.f32.mrb[0].mxu0
  %v357 = vadd.f32 0.0, %v356
  %v358 = vpop.f32.mrb[0].mxu0
  %359 = vmatprep.mubr.f32.mxu0 0.0
  %360 = vmatmul.mubr.f32.gmra.mrb[0].mxu0 %v280
  %v361 = vpop.f32.mrb[0].mxu0
  %v362 = vadd.f32 0.0, %v361
  %v363 = vpop.f32.mrb[0].mxu0
  %364 = vmatprep.mubr.f32.mxu0 0.0
  %365 = vmatmul.mubr.f32.gmra.mrb[0].mxu0 %v283
  %v366 = vpop.f32.mrb[0].mxu0
  %v367 = vadd.f32 0.0, %v366
  %v368 = vpop.f32.mrb[0].mxu0
  %369 = vdwg.mxu0
  %v370 = vld [vmem:[%s2] sm:$0xff]
  %v371 = vld [vmem:[%s2 + $0x8] sm:$0xff]
  %v372 = vld [vmem:[%s2 + $0x10] sm:$0xff]
  %v373 = vld [vmem:[%s2 + $0x18] sm:$0xff]
  %v374 = vld [vmem:[%s2 + $0x20] sm:$0xff]
  %v375 = vld [vmem:[%s2 + $0x28] sm:$0xff]
  %v376 = vld [vmem:[%s2 + $0x30] sm:$0xff]
  %v377 = vld [vmem:[%s2 + $0x38] sm:$0xff]
  %v378 = vld [vmem:[%s2 + $0x40] sm:$0xff]
  %v379 = vld [vmem:[%s2 + $0x48] sm:$0xff]
  %v380 = vld [vmem:[%s2 + $0x50] sm:$0xff]
  %v381 = vld [vmem:[%s2 + $0x58] sm:$0xff]
  %v382 = vld [vmem:[%s2 + $0x60] sm:$0xff]
  %v383 = vld [vmem:[%s2 + $0x68] sm:$0xff]
  %v384 = vld [vmem:[%s2 + $0x70] sm:$0xff]
  %v385 = vld [vmem:[%s2 + $0x78] sm:$0xff]
  %v386 = vld [vmem:[%s2 + $0x80] sm:$0xff]
  %v387 = vld [vmem:[%s2 + $0x88] sm:$0xff]
  %v388 = vld [vmem:[%s2 + $0x90] sm:$0xff]
  %v389 = vld [vmem:[%s2 + $0x98] sm:$0xff]
  %v390 = vld [vmem:[%s2 + $0xa0] sm:$0xff]
  %v391 = vld [vmem:[%s2 + $0xa8] sm:$0xff]
  %v392 = vld [vmem:[%s2 + $0xb0] sm:$0xff]
  %v393 = vld [vmem:[%s2 + $0xb8] sm:$0xff]
  %v394 = vld [vmem:[%s2 + $0xc0] sm:$0xff]
  %v395 = vld [vmem:[%s2 + $0xc8] sm:$0xff]
  %v396 = vld [vmem:[%s2 + $0xd0] sm:$0xff]
  %v397 = vld [vmem:[%s2 + $0xd8] sm:$0xff]
  %v398 = vld [vmem:[%s2 + $0xe0] sm:$0xff]
  %v399 = vld [vmem:[%s2 + $0xe8] sm:$0xff]
  %v400 = vld [vmem:[%s2 + $0xf0] sm:$0xff]
  %v401 = vld [vmem:[%s2 + $0xf8] sm:$0xff]
  %v402 = vld [vmem:[%s2 + $0x100] sm:$0xff]
  %v403 = vld [vmem:[%s2 + $0x108] sm:$0xff]
  %v404 = vld [vmem:[%s2 + $0x110] sm:$0xff]
  %v405 = vld [vmem:[%s2 + $0x118] sm:$0xff]
  %v406 = vld [vmem:[%s2 + $0x120] sm:$0xff]
  %v407 = vld [vmem:[%s2 + $0x128] sm:$0xff]
  %v408 = vld [vmem:[%s2 + $0x130] sm:$0xff]
  %v409 = vld [vmem:[%s2 + $0x138] sm:$0xff]
  %v410 = vld [vmem:[%s2 + $0x140] sm:$0xff]
  %v411 = vld [vmem:[%s2 + $0x148] sm:$0xff]
  %v412 = vld [vmem:[%s2 + $0x150] sm:$0xff]
  %v413 = vld [vmem:[%s2 + $0x158] sm:$0xff]
  %v414 = vld [vmem:[%s2 + $0x160] sm:$0xff]
  %v415 = vld [vmem:[%s2 + $0x168] sm:$0xff]
  %v416 = vld [vmem:[%s2 + $0x170] sm:$0xff]
  %v417 = vld [vmem:[%s2 + $0x178] sm:$0xff]
  %v418 = vld [vmem:[%s6] sm:$0x1]
  %v420 = vlaneseq
  %v421 = vshrl.u32 %v420, 7
  %v422 = vsub.s32 0, %v421
  %v423 = vrot.slane %v418, %v422
  %425 = vmatprep.subr.mxu0 0.0
  %426 = vmatpush1.msra.mxu0 %v370
  %427 = vmatprep.subr.mxu0 0.0
  %428 = vmatpush1.msra.mxu0 %v371
  %429 = vmatprep.subr.mxu0 0.0
  %430 = vmatpush1.msra.mxu0 %v372
  %431 = vmatprep.subr.mxu0 0.0
  %432 = vmatpush1.msra.mxu0 %v373
  %433 = vmatprep.subr.mxu0 0.0
  %434 = vmatpush1.msra.mxu0 %v374
  %435 = vmatprep.subr.mxu0 0.0
  %436 = vmatpush1.msra.mxu0 %v375
  %437 = vmatprep.subr.mxu0 0.0
  %438 = vmatpush1.msra.mxu0 %v376
  %439 = vmatprep.subr.mxu0 0.0
  %440 = vmatpush1.msra.mxu0 %v377
  %441 = vmatprep.subr.mxu0 0.0
  %442 = vmatpush1.msra.mxu0 %v378
  %443 = vmatprep.subr.mxu0 0.0
  %444 = vmatpush1.msra.mxu0 %v379
  %445 = vmatprep.subr.mxu0 0.0
  %446 = vmatpush1.msra.mxu0 %v380
  %447 = vmatprep.subr.mxu0 0.0
  %448 = vmatpush1.msra.mxu0 %v381
  %449 = vmatprep.subr.mxu0 0.0
  %450 = vmatpush1.msra.mxu0 %v382
  %451 = vmatprep.subr.mxu0 0.0
  %452 = vmatpush1.msra.mxu0 %v383
  %453 = vmatprep.subr.mxu0 0.0
  %454 = vmatpush1.msra.mxu0 %v384
  %455 = vmatprep.subr.mxu0 0.0
  %456 = vmatpush1.msra.mxu0 %v385
  %457 = vmatprep.subr.mxu0 0.0
  %458 = vmatpush1.msra.mxu0 %v386
  %459 = vmatprep.subr.mxu0 0.0
  %460 = vmatpush1.msra.mxu0 %v387
  %461 = vmatprep.subr.mxu0 0.0
  %462 = vmatpush1.msra.mxu0 %v388
  %463 = vmatprep.subr.mxu0 0.0
  %464 = vmatpush1.msra.mxu0 %v389
  %465 = vmatprep.subr.mxu0 0.0
  %466 = vmatpush1.msra.mxu0 %v390
  %467 = vmatprep.subr.mxu0 0.0
  %468 = vmatpush1.msra.mxu0 %v391
  %469 = vmatprep.subr.mxu0 0.0
  %470 = vmatpush1.msra.mxu0 %v392
  %471 = vmatprep.subr.mxu0 0.0
  %472 = vmatpush1.msra.mxu0 %v393
  %473 = vmatprep.subr.mxu0 0.0
  %474 = vmatpush1.msra.mxu0 %v394
  %475 = vmatprep.subr.mxu0 0.0
  %476 = vmatpush1.msra.mxu0 %v395
  %477 = vmatprep.subr.mxu0 0.0
  %478 = vmatpush1.msra.mxu0 %v396
  %479 = vmatprep.subr.mxu0 0.0
  %480 = vmatpush1.msra.mxu0 %v397
  %481 = vmatprep.subr.mxu0 0.0
  %482 = vmatpush1.msra.mxu0 %v398
  %483 = vmatprep.subr.mxu0 0.0
  %484 = vmatpush1.msra.mxu0 %v399
  %485 = vmatprep.subr.mxu0 0.0
  %486 = vmatpush1.msra.mxu0 %v400
  %487 = vmatprep.subr.mxu0 0.0
  %488 = vmatpush1.msra.mxu0 %v401
  %489 = vmatprep.mubr.f32.mxu0 %v163
  %490 = vmatmul.mubr.f32.gmra.mrb[0].mxu0 %v251
  %v491 = vpop.f32.mrb[0].mxu0
  %v492 = vadd.f32 %v423, %v491
  %v493 = vpop.f32.mrb[0].mxu0
  %494 = vmatprep.mubr.f32.mxu0 %v164
  %495 = vmatmul.mubr.f32.gmra.mrb[0].mxu0 %v256
  %v496 = vpop.f32.mrb[0].mxu0
  %v497 = vadd.f32 %v423, %v496
  %v498 = vpop.f32.mrb[0].mxu0
  %499 = vmatprep.mubr.f32.mxu0 %v165
  %500 = vmatmul.mubr.f32.gmra.mrb[0].mxu0 %v261
  %v501 = vpop.f32.mrb[0].mxu0
  %v502 = vadd.f32 %v423, %v501
  %v503 = vpop.f32.mrb[0].mxu0
  %504 = vmatprep.mubr.f32.mxu0 %v166
  %505 = vmatmul.mubr.f32.gmra.mrb[0].mxu0 %v266
  %v506 = vpop.f32.mrb[0].mxu0
  %v507 = vadd.f32 %v423, %v506
  %v508 = vpop.f32.mrb[0].mxu0
  %509 = vdwg.mxu0
  %510 = vmatprep.subr.mxu0 0.0
  %511 = vmatpush1.msra.mxu0 %v402
  %512 = vmatprep.subr.mxu0 0.0
  %513 = vmatpush1.msra.mxu0 %v403
  %514 = vmatprep.subr.mxu0 0.0
  %515 = vmatpush1.msra.mxu0 %v404
  %516 = vmatprep.subr.mxu0 0.0
  %517 = vmatpush1.msra.mxu0 %v405
  %518 = vmatprep.subr.mxu0 0.0
  %519 = vmatpush1.msra.mxu0 %v406
  %520 = vmatprep.subr.mxu0 0.0
  %521 = vmatpush1.msra.mxu0 %v407
  %522 = vmatprep.subr.mxu0 0.0
  %523 = vmatpush1.msra.mxu0 %v408
  %524 = vmatprep.subr.mxu0 0.0
  %525 = vmatpush1.msra.mxu0 %v409
  %526 = vmatprep.subr.mxu0 0.0
  %527 = vmatpush1.msra.mxu0 %v410
  %528 = vmatprep.subr.mxu0 0.0
  %529 = vmatpush1.msra.mxu0 %v411
  %530 = vmatprep.subr.mxu0 0.0
  %531 = vmatpush1.msra.mxu0 %v412
  %532 = vmatprep.subr.mxu0 0.0
  %533 = vmatpush1.msra.mxu0 %v413
  %534 = vmatprep.subr.mxu0 0.0
  %535 = vmatpush1.msra.mxu0 %v414
  %536 = vmatprep.subr.mxu0 0.0
  %537 = vmatpush1.msra.mxu0 %v415
  %538 = vmatprep.subr.mxu0 0.0
  %539 = vmatpush1.msra.mxu0 %v416
  %540 = vmatprep.subr.mxu0 0.0
  %541 = vmatpush1.msra.mxu0 %v417
  %542 = vmatprep.subr.mxu0 0.0
  %543 = vmatpush1.msra.mxu0 0.0
  %544 = vmatprep.subr.mxu0 0.0
  %545 = vmatpush1.msra.mxu0 0.0
  %546 = vmatprep.subr.mxu0 0.0
  %547 = vmatpush1.msra.mxu0 0.0
  %548 = vmatprep.subr.mxu0 0.0
  %549 = vmatpush1.msra.mxu0 0.0
  %550 = vmatprep.subr.mxu0 0.0
  %551 = vmatpush1.msra.mxu0 0.0
  %552 = vmatprep.subr.mxu0 0.0
  %553 = vmatpush1.msra.mxu0 0.0
  %554 = vmatprep.subr.mxu0 0.0
  %555 = vmatpush1.msra.mxu0 0.0
  %556 = vmatprep.subr.mxu0 0.0
  %557 = vmatpush1.msra.mxu0 0.0
  %558 = vmatprep.subr.mxu0 0.0
  %559 = vmatpush1.msra.mxu0 0.0
  %560 = vmatprep.subr.mxu0 0.0
  %561 = vmatpush1.msra.mxu0 0.0
  %562 = vmatprep.subr.mxu0 0.0
  %563 = vmatpush1.msra.mxu0 0.0
  %564 = vmatprep.subr.mxu0 0.0
  %565 = vmatpush1.msra.mxu0 0.0
  %566 = vmatprep.subr.mxu0 0.0
  %567 = vmatpush1.msra.mxu0 0.0
  %568 = vmatprep.subr.mxu0 0.0
  %569 = vmatpush1.msra.mxu0 0.0
  %570 = vmatprep.subr.mxu0 0.0
  %571 = vmatpush1.msra.mxu0 0.0
  %572 = vmatprep.subr.mxu0 0.0
  %573 = vmatpush1.msra.mxu0 0.0
  %574 = vmatprep.mubr.f32.mxu0 0.0
  %575 = vmatmul.mubr.f32.gmra.mrb[0].mxu0 %v352
  %v576 = vpop.f32.mrb[0].mxu0
  %v577 = vadd.f32 %v492, %v576
  %v578 = vpop.f32.mrb[0].mxu0
  %579 = vmatprep.mubr.f32.mxu0 0.0
  %580 = vmatmul.mubr.f32.gmra.mrb[0].mxu0 %v357
  %v581 = vpop.f32.mrb[0].mxu0
  %v582 = vadd.f32 %v497, %v581
  %v583 = vpop.f32.mrb[0].mxu0
  %584 = vmatprep.mubr.f32.mxu0 0.0
  %585 = vmatmul.mubr.f32.gmra.mrb[0].mxu0 %v362
  %v586 = vpop.f32.mrb[0].mxu0
  %v587 = vadd.f32 %v502, %v586
  %v588 = vpop.f32.mrb[0].mxu0
  %589 = vmatprep.mubr.f32.mxu0 0.0
  %590 = vmatmul.mubr.f32.gmra.mrb[0].mxu0 %v367
  %v591 = vpop.f32.mrb[0].mxu0
  %v592 = vadd.f32 %v507, %v591
  %v593 = vpop.f32.mrb[0].mxu0
  %594 = vdwg.mxu0
  %595 = vst [vmem:[%s7] sm:$0xff] %v577
  %596 = vst [vmem:[%s7 + $0x8] sm:$0xff] %v582
  %597 = vst [vmem:[%s7 + $0x10] sm:$0xff] %v587
  %598 = vst [vmem:[%s7 + $0x18] sm:$0xff] %v592
  // Predicated region
  $region30: #{sequential_module_forward.1} parent=0 // pred_check
    _
  $region31: #{sequential_module_forward.1} parent=0 // pred_check_branch
    %600 = sbr.rel (0) target = $region33
  $region32: #{sequential_module_forward.1} parent=0 // pred_region
    _
  $region33: #{sequential_module_forward.1} parent=0 // pred_fallthru
    _
  // Predicated region
  $region34: #{sequential_module_forward.1} parent=0 // pred_check
    _
  $region35: #{sequential_module_forward.1} parent=0 // pred_check_branch
    %602 = sbr.rel (0) target = $region37
  $region36: #{sequential_module_forward.1} parent=0 // pred_region
    _
  $region37: #{sequential_module_forward.1} parent=0 // pred_fallthru
    _

</llo_original>
